<compile_context>
chip_gen: v7x
topology: tpu7x:2x2x1
jax: 0.10.0
libtpu: 0.0.40
codegen_flags: <defaults>
</compile_context>

<pallas_src>
import jax
import jax.numpy as jnp
import numpy as np
from jax.experimental import pallas as pl
from jax.experimental.pallas import tpu as pltpu


# ---------------------------------------------------------------------------
# Kernels
# ---------------------------------------------------------------------------
def _make_weighted_sum_kernel(num_detectors):
    """VPU weighted-sum kernel: o = sum_d w[d] * s_d.

    Args (in order): weights SMEM ref (D,), D score VMEM tiles (tr, L),
    output VMEM tile (tr, L).
    """

    def kernel(w_ref, *refs):
        score_refs = refs[:num_detectors]
        o_ref = refs[num_detectors]
        acc = w_ref[0] * score_refs[0][...]
        for d in range(1, num_detectors):
            acc = acc + w_ref[d] * score_refs[d][...]
        o_ref[...] = acc.astype(o_ref.dtype)

    return kernel


def _make_max_kernel(num_detectors, tr, lane, n_valid):
    """Elementwise-max ensemble + argmax-frequency counts.

    Args (in order): D score VMEM tiles (tr, L), ensemble out tile (tr, L),
    counts out block (8, 128) (resident accumulator across the grid).
    """

    def kernel(*refs):
        score_refs = refs[:num_detectors]
        ens_ref = refs[num_detectors]
        counts_ref = refs[num_detectors + 1]

        j = pl.program_id(0)

        @pl.when(j == 0)
        def _():
            counts_ref[...] = jnp.zeros_like(counts_ref)

        best = score_refs[0][...]
        best_idx = jnp.zeros(best.shape, jnp.int32)
        for d in range(1, num_detectors):
            sd = score_refs[d][...]
            take = sd > best              # strict '>' keeps first occurrence on ties
            best = jnp.where(take, sd, best)
            best_idx = jnp.where(take, d, best_idx)
        ens_ref[...] = best.astype(ens_ref.dtype)

        # Mask out zero-padded elements (flat index >= n_valid).
        row_ids = jax.lax.broadcasted_iota(jnp.int32, (tr, lane), 0) + j * tr
        col_ids = jax.lax.broadcasted_iota(jnp.int32, (tr, lane), 1)
        valid = (row_ids * lane + col_ids) < n_valid

        lane_ids = jax.lax.broadcasted_iota(jnp.int32, (8, 128), 1)
        update = jnp.zeros((8, 128), jnp.float32)
        for d in range(num_detectors):
            ind = jnp.logical_and(valid, best_idx == d)
            cnt_d = jnp.sum(jnp.where(ind, 1.0, 0.0))
            update = update + jnp.where(lane_ids == d, cnt_d, 0.0)
        counts_ref[...] = counts_ref[...] + update

    return kernel


# ---------------------------------------------------------------------------
# Host-side layout helpers
# ---------------------------------------------------------------------------
def _choose_tiles(n, lane_tile, row_tile):
    """Pick a lane width L (multiple of 128) and sublane tile tr (multiple of 8),
    shrinking for small N to limit zero padding."""
    L = lane_tile
    while L > 128 and n <= L // 2:
        L //= 2
    L = max(128, (L // 128) * 128)
    rows = -(-n // L)  # cdiv
    tr = row_tile
    while tr > 8 and rows <= tr // 2:
        tr //= 2
    tr = max(8, (tr // 8) * 8)
    rows_padded = -(-rows // tr) * tr
    return L, tr, rows_padded


def _layout_scores(scores, n, lane_tile, row_tile):
    L, tr, rows_padded = _choose_tiles(n, lane_tile, row_tile)
    n_pad = rows_padded * L

    def to_2d(s):
        if n_pad != n:
            s = jnp.pad(s, (0, n_pad - n))
        return s.reshape(rows_padded, L)

    return [to_2d(s) for s in scores], L, tr, rows_padded, n_pad


# ---------------------------------------------------------------------------
# Public wrapper: AnomalyScoreEnsemble.forward
# ---------------------------------------------------------------------------
def anomaly_score_ensemble(detector_scores,
                           num_detectors=4,
                           fusion_method="dynamic_weight",
                           lane_tile=1024,
                           row_tile=128):
    """JAX/Pallas equivalent of AnomalyScoreEnsemble.forward.

    detector_scores: dict name->(N,) array or list of (N,) arrays.
    Returns (ensemble_score [N], weights [D]).
    """
    if isinstance(detector_scores, dict):
        scores = list(detector_scores.values())
    else:
        scores = list(detector_scores)
    if len(scores) != num_detectors:
        raise ValueError("detector count mismatch")

    D = num_detectors
    scores = [jnp.asarray(s, jnp.float32).reshape(-1) for s in scores]
    N = scores[0].shape[0]

    scores_2d, L, tr, rows_padded, n_pad = _layout_scores(
        scores, N, lane_tile, row_tile)
    grid = (rows_padded // tr,)

    if fusion_method in ("dynamic_weight", "mean", "static_weight"):
        if fusion_method == "static_weight":
            # Buffer init: ones(D)/D, softmax at forward time (still uniform
            # unless set_weights was called; we model the default init).
            w0 = jnp.full((D,), 1.0 / D, dtype=jnp.float32)
            weights = jax.nn.softmax(w0, axis=0)
        else:
            # Reference discards the variance weights and uses uniform 1/D,
            # then renormalizes (still uniform).  'mean' is identical.
            weights = jnp.full((D,), 1.0 / D, dtype=jnp.float32)

        kernel = _make_weighted_sum_kernel(D)
        # index_maps receive the scalar-prefetch ref (weights) as trailing arg.
        in_specs = [pl.BlockSpec((tr, L), lambda j, w: (j, 0)) for _ in range(D)]
        out_spec = pl.BlockSpec((tr, L), lambda j, w: (j, 0))
        cost = pl.CostEstimate(
            flops=2 * D * n_pad,
            transcendentals=0,
            bytes_accessed=(D + 1) * n_pad * 4,
        )
        out2d = pl.pallas_call(
            kernel,
            out_shape=jax.ShapeDtypeStruct((rows_padded, L), jnp.float32),
            grid_spec=pltpu.PrefetchScalarGridSpec(
                num_scalar_prefetch=1,
                grid=grid,
                in_specs=in_specs,
                out_specs=out_spec,
            ),
            compiler_params=pltpu.CompilerParams(
                dimension_semantics=("parallel",),
            ),
            cost_estimate=cost,
        )(weights, *scores_2d)
        ensemble = out2d.reshape(n_pad)[:N]

    elif fusion_method == "max":
        kernel = _make_max_kernel(D, tr, L, N)
        in_specs = [pl.BlockSpec((tr, L), lambda j: (j, 0)) for _ in range(D)]
        out_specs = [
            pl.BlockSpec((tr, L), lambda j: (j, 0)),
            pl.BlockSpec((8, 128), lambda j: (0, 0)),   # resident counts acc
        ]
        cost = pl.CostEstimate(
            flops=4 * D * n_pad,
            transcendentals=0,
            bytes_accessed=(D + 1) * n_pad * 4,
        )
        out2d, counts = pl.pallas_call(
            kernel,
            out_shape=(
                jax.ShapeDtypeStruct((rows_padded, L), jnp.float32),
                jax.ShapeDtypeStruct((8, 128), jnp.float32),
            ),
            grid_spec=pltpu.PrefetchScalarGridSpec(
                num_scalar_prefetch=0,
                grid=grid,
                in_specs=in_specs,
                out_specs=out_specs,
            ),
            compiler_params=pltpu.CompilerParams(
                dimension_semantics=("arbitrary",),   # counts accumulate across grid
            ),
            cost_estimate=cost,
        )(*scores_2d)
        ensemble = out2d.reshape(n_pad)[:N]
        weights = counts[0, :D] / jnp.float32(N)

    else:
        raise NotImplementedError(fusion_method)

    # TODO(synk): detector_performance / update_count bookkeeping in the
    # reference is host-side Python state (dict of .item() histories), not part
    # of the returned tensors, so it is not mirrored here.
    return ensemble, weights


# ---------------------------------------------------------------------------
# Self-test
# ---------------------------------------------------------------------------
if __name__ == "__main__":
    key = jax.random.PRNGKey(0)
    D = 4          # num_detectors
    N = 256        # per-detector anomaly-score length
    keys = jax.random.split(key, D)
    detector_scores = {
        f"detector_{i}": jax.random.uniform(keys[i], (N,), dtype=jnp.float32)
        for i in range(D)
    }
    stacked = jnp.stack([detector_scores[f"detector_{i}"] for i in range(D)], axis=0)

    # --- dynamic_weight (default) ---
    ensemble_score, weights = anomaly_score_ensemble(
        detector_scores, num_detectors=D, fusion_method="dynamic_weight")
    ensemble_score = jax.block_until_ready(ensemble_score)
    weights = jax.block_until_ready(weights)
    ref = jnp.matmul(jnp.full((D,), 1.0 / D, jnp.float32), stacked)
    assert ensemble_score.shape == (N,)
    assert weights.shape == (D,)
    np.testing.assert_allclose(np.asarray(ensemble_score), np.asarray(ref),
                               rtol=1e-5, atol=1e-5)
    np.testing.assert_allclose(np.asarray(weights), np.full((D,), 1.0 / D),
                               rtol=1e-6, atol=1e-6)

    # --- static_weight (softmax of uniform -> uniform) ---
    ens_sw, w_sw = anomaly_score_ensemble(
        detector_scores, num_detectors=D, fusion_method="static_weight")
    jax.block_until_ready(ens_sw)
    np.testing.assert_allclose(np.asarray(ens_sw), np.asarray(ref),
                               rtol=1e-5, atol=1e-5)

    # --- max fusion ---
    ens_mx, w_mx = anomaly_score_ensemble(
        detector_scores, num_detectors=D, fusion_method="max")
    ens_mx = jax.block_until_ready(ens_mx)
    w_mx = jax.block_until_ready(w_mx)
    ens_mx_ref = jnp.max(stacked, axis=0)
    idx_ref = jnp.argmax(stacked, axis=0)
    w_mx_ref = jnp.stack([(idx_ref == i).astype(jnp.float32).mean()
                          for i in range(D)])
    np.testing.assert_allclose(np.asarray(ens_mx), np.asarray(ens_mx_ref),
                               rtol=1e-5, atol=1e-5)
    np.testing.assert_allclose(np.asarray(w_mx), np.asarray(w_mx_ref),
                               rtol=1e-5, atol=1e-5)

    print("KERNEL_OK")
</pallas_src>

<mosaic_0001>
module attributes {stable_mosaic.version = 11 : i64} {
  func.func @kernel(%arg0: i32, %arg1: memref<4xf32, #tpu.memory_space<smem>>, %arg2: memref<8x256xf32, #tpu.memory_space<vmem>>, %arg3: memref<8x256xf32, #tpu.memory_space<vmem>>, %arg4: memref<8x256xf32, #tpu.memory_space<vmem>>, %arg5: memref<8x256xf32, #tpu.memory_space<vmem>>, %arg6: memref<8x256xf32, #tpu.memory_space<vmem>>) attributes {dimension_semantics = [#tpu.dimension_semantics<parallel>], iteration_bounds = array<i64: 1>, scalar_prefetch = 1 : i64, scratch_operands = 0 : i64, tpu.core_type = #tpu.core_type<tc>, window_params = [{transform_indices = @transform_0, window_bounds = array<i64: 8, 256>}, {transform_indices = @transform_1, window_bounds = array<i64: 8, 256>}, {transform_indices = @transform_2, window_bounds = array<i64: 8, 256>}, {transform_indices = @transform_3, window_bounds = array<i64: 8, 256>}, {transform_indices = @transform_4, window_bounds = array<i64: 8, 256>}]} {
    %c0 = arith.constant 0 : index
    %0 = memref.load %arg1[%c0] : memref<4xf32, #tpu.memory_space<smem>>
    %c0_0 = arith.constant 0 : index
    %c0_1 = arith.constant 0 : index
    %1 = vector.load %arg2[%c0_0, %c0_1] : memref<8x256xf32, #tpu.memory_space<vmem>>, vector<8x256xf32>
    %2 = vector.broadcast %0 : f32 to vector<8x256xf32>
    %3 = arith.mulf %2, %1 : vector<8x256xf32>
    %c1 = arith.constant 1 : index
    %4 = memref.load %arg1[%c1] : memref<4xf32, #tpu.memory_space<smem>>
    %c0_2 = arith.constant 0 : index
    %c0_3 = arith.constant 0 : index
    %5 = vector.load %arg3[%c0_2, %c0_3] : memref<8x256xf32, #tpu.memory_space<vmem>>, vector<8x256xf32>
    %6 = vector.broadcast %4 : f32 to vector<8x256xf32>
    %7 = arith.mulf %6, %5 : vector<8x256xf32>
    %8 = arith.addf %3, %7 : vector<8x256xf32>
    %c2 = arith.constant 2 : index
    %9 = memref.load %arg1[%c2] : memref<4xf32, #tpu.memory_space<smem>>
    %c0_4 = arith.constant 0 : index
    %c0_5 = arith.constant 0 : index
    %10 = vector.load %arg4[%c0_4, %c0_5] : memref<8x256xf32, #tpu.memory_space<vmem>>, vector<8x256xf32>
    %11 = vector.broadcast %9 : f32 to vector<8x256xf32>
    %12 = arith.mulf %11, %10 : vector<8x256xf32>
    %13 = arith.addf %8, %12 : vector<8x256xf32>
    %c3 = arith.constant 3 : index
    %14 = memref.load %arg1[%c3] : memref<4xf32, #tpu.memory_space<smem>>
    %c0_6 = arith.constant 0 : index
    %c0_7 = arith.constant 0 : index
    %15 = vector.load %arg5[%c0_6, %c0_7] : memref<8x256xf32, #tpu.memory_space<vmem>>, vector<8x256xf32>
    %16 = vector.broadcast %14 : f32 to vector<8x256xf32>
    %17 = arith.mulf %16, %15 : vector<8x256xf32>
    %18 = arith.addf %13, %17 : vector<8x256xf32>
    %c0_8 = arith.constant 0 : index
    %c0_9 = arith.constant 0 : index
    %19 = vector.load %arg6[%c0_8, %c0_9] : memref<8x256xf32, #tpu.memory_space<vmem>>, vector<8x256xf32>
    tpu.vector_store %arg6[%c0_8, %c0_9], %18 {strides = array<i32>} : memref<8x256xf32, #tpu.memory_space<vmem>>, vector<8x256xf32>,
    return
  }
  func.func @transform_0(%arg0: i32, %arg1: memref<4xf32, #tpu.memory_space<smem>>) -> (i32, i32) {
    %c0_i32 = arith.constant 0 : i32
    %c0_i32_0 = arith.constant 0 : i32
    return %arg0, %c0_i32 : i32, i32
  }
  func.func @transform_1(%arg0: i32, %arg1: memref<4xf32, #tpu.memory_space<smem>>) -> (i32, i32) {
    %c0_i32 = arith.constant 0 : i32
    %c0_i32_0 = arith.constant 0 : i32
    return %arg0, %c0_i32 : i32, i32
  }
  func.func @transform_2(%arg0: i32, %arg1: memref<4xf32, #tpu.memory_space<smem>>) -> (i32, i32) {
    %c0_i32 = arith.constant 0 : i32
    %c0_i32_0 = arith.constant 0 : i32
    return %arg0, %c0_i32 : i32, i32
  }
  func.func @transform_3(%arg0: i32, %arg1: memref<4xf32, #tpu.memory_space<smem>>) -> (i32, i32) {
    %c0_i32 = arith.constant 0 : i32
    %c0_i32_0 = arith.constant 0 : i32
    return %arg0, %c0_i32 : i32, i32
  }
  func.func @transform_4(%arg0: i32, %arg1: memref<4xf32, #tpu.memory_space<smem>>) -> (i32, i32) {
    %c0_i32 = arith.constant 0 : i32
    %c0_i32_0 = arith.constant 0 : i32
    return %arg0, %c0_i32 : i32, i32
  }
}

</mosaic_0001>

<llo_original>
// kernel: tpu_custom_call.1
$region0: #{tpu_custom_call.1}
  #allocation0 [shape = 'u32[]', space=smem, size = 0x4, offset = 0x4, fixed_abs, tag = 'smem constant byte address 0x4 - core index']
  #allocation1 [shape = 'u32[144,128]{1,0:T(1,128)}', space=vmem, size = 0x12000, scoped, tag = 'internal scratch']
  #allocation2 [shape = 's32[1]{0}', space=sflag, size = 0x4, scoped, tag = 'scoped memory for tpu_custom_call.1']
  #allocation3 [shape = 'u8[512]{0}', space=smem, size = 0x200, scoped, tag = 'prefetched SMEM operand 0']
  %s0 = inlined_call_operand.hbm [shape: f32[4], index: 0, kind: input, shape index: {}]
  %s1 = inlined_call_operand.hbm [shape: f32[8,256], index: 1, kind: input, shape index: {}]
  %s2 = inlined_call_operand.hbm [shape: f32[8,256], index: 2, kind: input, shape index: {}]
  %s3 = inlined_call_operand.hbm [shape: f32[8,256], index: 3, kind: input, shape index: {}]
  %s4 = inlined_call_operand.hbm [shape: f32[8,256], index: 4, kind: input, shape index: {}]
  %s5 = inlined_call_operand.hbm [shape: f32[8,256], index: 5, kind: output, shape index: {}]
  %s6 = sld [smem:[#allocation0]]
  $region42: #{tpu_custom_call.1} parent=0
    _
  %s8 = ssub.s32 1, %s6
  %s9 = scalar_select 0, %s8, %s6
  %11 = dma.hbm_to_smem %s0, 16, [#allocation3], [#allocation2]
  %12 = dma.done [#allocation2], 16
  %13 = sfence
  $region1: #{tpu_custom_call.1} parent=0
    #allocation4 [shape = 'u8[8192]{0}', space=vmem, size = 0x2000, scoped, tag = 'input window, operand 1, single buffered']
    #allocation5 [shape = 's32[1]{0}', space=sflag, size = 0x4, scoped, tag = 'scoped memory for tpu_custom_call.1']
    #allocation6 [shape = 's32[1]{0}', space=sflag, size = 0x4, scoped, tag = 'scoped memory for tpu_custom_call.1']
    #allocation7 [shape = 'u8[8192]{0}', space=vmem, size = 0x2000, scoped, tag = 'input window, operand 2, single buffered']
    #allocation8 [shape = 's32[1]{0}', space=sflag, size = 0x4, scoped, tag = 'scoped memory for tpu_custom_call.1']
    #allocation9 [shape = 'u8[8192]{0}', space=vmem, size = 0x2000, scoped, tag = 'input window, operand 3, single buffered']
    #allocation10 [shape = 'u8[8192]{0}', space=vmem, size = 0x2000, scoped, tag = 'input window, operand 4, single buffered']
    #allocation11 [shape = 's32[1]{0}', space=sflag, size = 0x4, scoped, tag = 'scoped memory for tpu_custom_call.1']
    #allocation12 [shape = 'u8[8192]{0}', space=vmem, size = 0x2000, scoped, tag = 'output window, operand 0, single buffered']
    %14 = vsyncpa [#allocation5], 0
    %15 = vsyncpa [#allocation8], 0
    %16 = vsyncpa [#allocation11], 0
    %17 = vsyncpa [#allocation6], 0
    // Predicated region
    $region2: #{tpu_custom_call.1} parent=1 // pred_check
      _
    $region3: #{tpu_custom_call.1} parent=1 // pred_check_branch
      %19 = sbr.rel (0) target = $region5
    $region4: #{tpu_custom_call.1} parent=1 // pred_region
      %s21 = ssub.s32 256, 256
      %22 = vsyncadd [#allocation5], %s21
      %s24 = sshll.u32 [#allocation4], 4
      %s25 = int_to_ptr.vmem [resolvable:$true] %s24
      %27 = dma.hbm_to_vmem [thread:$0]  %s1, 256, %s25, [#allocation5]
    $region5: #{tpu_custom_call.1} parent=1 // pred_fallthru
      _
    // Predicated region
    $region6: #{tpu_custom_call.1} parent=1 // pred_check
      _
    $region7: #{tpu_custom_call.1} parent=1 // pred_check_branch
      %29 = sbr.rel (0) target = $region9
    $region8: #{tpu_custom_call.1} parent=1 // pred_region
      %s31 = ssub.s32 256, 256
      %32 = vsyncadd [#allocation8], %s31
      %s34 = sshll.u32 [#allocation7], 4
      %s35 = int_to_ptr.vmem [resolvable:$true] %s34
      %37 = dma.hbm_to_vmem [thread:$0]  %s2, 256, %s35, [#allocation8]
    $region9: #{tpu_custom_call.1} parent=1 // pred_fallthru
      _
    // Predicated region
    $region10: #{tpu_custom_call.1} parent=1 // pred_check
      _
    $region11: #{tpu_custom_call.1} parent=1 // pred_check_branch
      %39 = sbr.rel (0) target = $region13
    $region12: #{tpu_custom_call.1} parent=1 // pred_region
      %s41 = ssub.s32 256, 256
      %42 = vsyncadd [#allocation8], %s41
      %s44 = sshll.u32 [#allocation9], 4
      %s45 = int_to_ptr.vmem [resolvable:$true] %s44
      %47 = dma.hbm_to_vmem [thread:$0]  %s3, 256, %s45, [#allocation8]
    $region13: #{tpu_custom_call.1} parent=1 // pred_fallthru
      _
    // Predicated region
    $region14: #{tpu_custom_call.1} parent=1 // pred_check
      _
    $region15: #{tpu_custom_call.1} parent=1 // pred_check_branch
      %49 = sbr.rel (0) target = $region17
    $region16: #{tpu_custom_call.1} parent=1 // pred_region
      %s51 = ssub.s32 256, 256
      %52 = vsyncadd [#allocation11], %s51
      %s54 = sshll.u32 [#allocation10], 4
      %s55 = int_to_ptr.vmem [resolvable:$true] %s54
      %57 = dma.hbm_to_vmem [thread:$0]  %s4, 256, %s55, [#allocation11]
    $region17: #{tpu_custom_call.1} parent=1 // pred_fallthru
      _
    // Predicated region
    $region18: #{tpu_custom_call.1} parent=1 // pred_check
      _
    $region19: #{tpu_custom_call.1} parent=1 // pred_check_branch
      %59 = sbr.rel (0) target = $region21
    $region20: #{tpu_custom_call.1} parent=1 // pred_region
      %60 = dma.done [#allocation5], 256
    $region21: #{tpu_custom_call.1} parent=1 // pred_fallthru
      _
    // Predicated region
    $region22: #{tpu_custom_call.1} parent=1 // pred_check
      _
    $region23: #{tpu_custom_call.1} parent=1 // pred_check_branch
      %62 = sbr.rel (0) target = $region25
    $region24: #{tpu_custom_call.1} parent=1 // pred_region
      %63 = dma.done [#allocation8], 256
    $region25: #{tpu_custom_call.1} parent=1 // pred_fallthru
      _
    // Predicated region
    $region26: #{tpu_custom_call.1} parent=1 // pred_check
      _
    $region27: #{tpu_custom_call.1} parent=1 // pred_check_branch
      %65 = sbr.rel (0) target = $region29
    $region28: #{tpu_custom_call.1} parent=1 // pred_region
      %66 = dma.done [#allocation8], 256
    $region29: #{tpu_custom_call.1} parent=1 // pred_fallthru
      _
    // Predicated region
    $region30: #{tpu_custom_call.1} parent=1 // pred_check
      _
    $region31: #{tpu_custom_call.1} parent=1 // pred_check_branch
      %68 = sbr.rel (0) target = $region33
    $region32: #{tpu_custom_call.1} parent=1 // pred_region
      %69 = dma.done [#allocation11], 256
    $region33: #{tpu_custom_call.1} parent=1 // pred_fallthru
      _
    %s70 = sld [smem:[#allocation3]]
    %v71 = vld [vmem:[#allocation4] sm:$0xff]
    %v72 = vld [vmem:[#allocation4 + $0x8] sm:$0xff]
    %v73 = vstv %s70
    %v74 = vmul.f32 %v73, %v71
    %v75 = vmul.f32 %v73, %v72
    %s76 = sld [smem:[#allocation3 + $0x1]]
    %v77 = vld [vmem:[#allocation7] sm:$0xff]
    %v78 = vld [vmem:[#allocation7 + $0x8] sm:$0xff]
    %v79 = vstv %s76
    %v80 = vmul.f32 %v79, %v77
    %v81 = vmul.f32 %v79, %v78
    %v82 = vadd.f32 %v74, %v80
    %v83 = vadd.f32 %v75, %v81
    %s84 = sld [smem:[#allocation3 + $0x2]]
    %v85 = vld [vmem:[#allocation9] sm:$0xff]
    %v86 = vld [vmem:[#allocation9 + $0x8] sm:$0xff]
    %v87 = vstv %s84
    %v88 = vmul.f32 %v87, %v85
    %v89 = vmul.f32 %v87, %v86
    %v90 = vadd.f32 %v82, %v88
    %v91 = vadd.f32 %v83, %v89
    %s92 = sld [smem:[#allocation3 + $0x3]]
    %v93 = vld [vmem:[#allocation10] sm:$0xff]
    %v94 = vld [vmem:[#allocation10 + $0x8] sm:$0xff]
    %v95 = vstv %s92
    %v96 = vmul.f32 %v95, %v93
    %v97 = vmul.f32 %v95, %v94
    %v98 = vadd.f32 %v90, %v96
    %v99 = vadd.f32 %v91, %v97
    %100 = vst [vmem:[#allocation12] sm:$0xff] %v98
    %101 = vst [vmem:[#allocation12 + $0x8] sm:$0xff] %v99
    // Predicated region
    $region34: #{tpu_custom_call.1} parent=1 // pred_check
      _
    $region35: #{tpu_custom_call.1} parent=1 // pred_check_branch
      %103 = sbr.rel (0) target = $region37
    $region36: #{tpu_custom_call.1} parent=1 // pred_region
      %s105 = ssub.s32 256, 256
      %106 = vsyncadd [#allocation6], %s105
      %s108 = sshll.u32 [#allocation12], 4
      %s109 = int_to_ptr.vmem [resolvable:$true] %s108
      %111 = dma.vmem_to_hbm [thread:$0]  %s109, 256, %s5, [#allocation6]
    $region37: #{tpu_custom_call.1} parent=1 // pred_fallthru
      _
    // Predicated region
    $region38: #{tpu_custom_call.1} parent=1 // pred_check
      _
    $region39: #{tpu_custom_call.1} parent=1 // pred_check_branch
      %113 = sbr.rel (0) target = $region41
    $region40: #{tpu_custom_call.1} parent=1 // pred_region
      %114 = dma.done [#allocation6], 256
    $region41: #{tpu_custom_call.1} parent=1 // pred_fallthru
      _
    %115 = vsyncpa [#allocation5], 1
    %116 = vsyncpa [#allocation8], 1
    %117 = vsyncpa [#allocation11], 1
    %118 = vsyncpa [#allocation6], 1

</llo_original>
